<compile_context>
chip_gen: v7x
topology: tpu7x:2x2x1
jax: 0.10.0
libtpu: 0.0.40
codegen_flags: <defaults>
</compile_context>

<pallas_src>
import math
import functools

import jax
import jax.numpy as jnp
from jax.experimental import pallas as pl
from jax.experimental.pallas import tpu as pltpu

_SQRT_HALF = 0.7071067811865476
_MASK_BIAS = -1e30                 # finite additive causal bias (no inf-inf NaN risk)
_VMEM_LIMIT = 48 * 1024 * 1024     # raised scoped VMEM; safe on v5e/v6e/v7x


def _erf(x):
    # Abramowitz & Stegun 7.1.26 rational approximation (max abs err ~1.5e-7),
    # used because lax.erf has no guaranteed Pallas/Mosaic lowering.
    # TODO(synk): switch to lax.erf if Mosaic exposes a direct lowering.
    a1, a2, a3, a4, a5 = (0.254829592, -0.284496736, 1.421413741,
                          -1.453152027, 1.061405429)
    p = 0.3275911
    s = jnp.where(x >= 0.0, 1.0, -1.0)
    z = jnp.abs(x)
    t = 1.0 / (1.0 + p * z)
    poly = ((((a5 * t + a4) * t + a3) * t + a2) * t + a1) * t
    return s * (1.0 - poly * jnp.exp(-z * z))


def _gelu(x):
    # exact (erf-based) GELU in f32, matching torch.nn.GELU() default
    return 0.5 * x * (1.0 + _erf(x * _SQRT_HALF))


def _layernorm(x, gamma, beta, eps=1e-5):
    mean = jnp.mean(x, axis=-1, keepdims=True)
    var = jnp.mean((x - mean) ** 2, axis=-1, keepdims=True)  # biased variance
    return gamma * (x - mean) / jnp.sqrt(var + eps) + beta


# ----------------------------------------------------------------------------
# Pallas kernels
# ----------------------------------------------------------------------------
def _ln_qkv_kernel(x_ref, g_ref, b_ref, wqkv_ref, q_ref, k_ref, v_ref, *,
                   num_heads, head_dim):
    """prenorm-1 + fused QKV projection for one (batch, seq-tile)."""
    x = x_ref[0]                                           # (tq, D) f32
    D = x.shape[-1]
    n1 = _layernorm(x, g_ref[...], b_ref[...])
    qkv = jnp.dot(n1.astype(jnp.bfloat16), wqkv_ref[...],
                  preferred_element_type=jnp.float32)      # (tq, 3D) f32 acc
    for h in range(num_heads):                             # static head split
        lo = h * head_dim
        q_ref[0, h] = qkv[:, lo:lo + head_dim].astype(jnp.bfloat16)
        k_ref[0, h] = qkv[:, D + lo:D + lo + head_dim].astype(jnp.bfloat16)
        v_ref[0, h] = qkv[:, 2 * D + lo:2 * D + lo + head_dim].astype(jnp.bfloat16)


def _flash_attn_kernel(q_ref, k_ref, v_ref, o_ref, m_sc, l_sc, acc_sc, *,
                       tq, tkv, num_heads, head_dim):
    """Flash-style causal attention: stream K/V tiles with online softmax.

    Grid: (batch, q-tiles, kv-tiles); kv axis is the 'arbitrary' reduction axis.
    The 1/sqrt(dk) scale is already folded into Wq.
    """
    qi = pl.program_id(1)
    ki = pl.program_id(2)

    @pl.when(ki == 0)
    def _init():
        m_sc[...] = jnp.full(m_sc.shape, -jnp.inf, jnp.float32)
        l_sc[...] = jnp.zeros(l_sc.shape, jnp.float32)
        acc_sc[...] = jnp.zeros(acc_sc.shape, jnp.float32)

    # Skip K/V tiles that lie entirely above the causal diagonal.
    @pl.when(ki * tkv <= qi * tq + (tq - 1))
    def _update():
        q = q_ref[0]                                       # (H, tq, dh) bf16
        k = k_ref[0]                                       # (H, tkv, dh) bf16
        v = v_ref[0]                                       # (H, tkv, dh) bf16
        s = jax.lax.dot_general(                           # (H, tq, tkv) f32
            q, k, (((2,), (2,)), ((0,), (0,))),
            preferred_element_type=jnp.float32)
        row = qi * tq + jax.lax.broadcasted_iota(jnp.int32, (tq, tkv), 0)
        col = ki * tkv + jax.lax.broadcasted_iota(jnp.int32, (tq, tkv), 1)
        bias = jnp.where(col > row, jnp.float32(_MASK_BIAS), jnp.float32(0.0))
        s = s + bias[None, :, :]
        m_prev = m_sc[...]                                 # (H, tq, 1)
        m_new = jnp.maximum(m_prev, jnp.max(s, axis=-1, keepdims=True))
        alpha = jnp.exp(m_prev - m_new)
        p = jnp.exp(s - m_new)
        l_sc[...] = alpha * l_sc[...] + jnp.sum(p, axis=-1, keepdims=True)
        acc_sc[...] = alpha * acc_sc[...] + jax.lax.dot_general(
            p.astype(jnp.bfloat16), v, (((2,), (1,)), ((0,), (0,))),
            preferred_element_type=jnp.float32)            # (H, tq, dh)
        m_sc[...] = m_new

    @pl.when(ki == pl.num_programs(2) - 1)
    def _finalize():
        out = acc_sc[...] / l_sc[...]                      # (H, tq, dh) f32
        for h in range(num_heads):                         # concat heads -> (tq, D)
            o_ref[0, :, h * head_dim:(h + 1) * head_dim] = out[h].astype(o_ref.dtype)


def _attn_out_ffn_kernel(x_ref, a_ref, wo_ref, bo_ref, g2_ref, b2_ref,
                         w1_ref, bf1_ref, w2_ref, bf2_ref, o_ref):
    """output projection + residual + prenorm-2 + feedforward + residual."""
    x = x_ref[0]                                           # (tq, D) f32
    attn_proj = jnp.dot(a_ref[0], wo_ref[...],
                        preferred_element_type=jnp.float32) + bo_ref[...]
    x1 = x + attn_proj                                     # residual 1
    n2 = _layernorm(x1, g2_ref[...], b2_ref[...])
    # TODO(synk): tile the FFN hidden dim F with a reduction grid axis for very
    # large D on v7x (64 MiB VMEM) instead of holding w1/w2 fully resident.
    h1 = jnp.dot(n2.astype(jnp.bfloat16), w1_ref[...],
                 preferred_element_type=jnp.float32) + bf1_ref[...]
    h1 = _gelu(h1)
    h2 = jnp.dot(h1.astype(jnp.bfloat16), w2_ref[...],
                 preferred_element_type=jnp.float32) + bf2_ref[...]
    o_ref[0] = x1 + h2                                     # residual 2


def _head_kernel(x_ref, g_ref, b_ref, wh_ref, bh_ref, o_ref):
    """prehead LayerNorm + vocab-tiled logits projection (lane-dense output)."""
    n = _layernorm(x_ref[0], g_ref[...], b_ref[...])
    o_ref[0] = (jnp.dot(n.astype(jnp.bfloat16), wh_ref[...],
                        preferred_element_type=jnp.float32) + bh_ref[...])


# ----------------------------------------------------------------------------
# Wrappers (BlockSpecs / grids)
# ----------------------------------------------------------------------------
def _const_spec(a, grid_rank):
    # Grid-constant (fully resident) weight block.
    # TODO(synk): single-buffer via pipeline_mode=pl.Buffered(1) once stable.
    zeros = (0,) * a.ndim
    maps = {1: lambda b: zeros,
            2: lambda b, i: zeros,
            3: lambda b, i, j: zeros}
    return pl.BlockSpec(a.shape, maps[grid_rank])


def _pick_seq_tile(n, preferred):
    # sublane-dim tile: must divide n and be a multiple of 16, or equal n.
    if n <= preferred:
        return n
    for t in (preferred, 512, 256, 128, 64, 32, 16):
        if t <= preferred and n % t == 0:
            return t
    return n


def _pick_lane_tile(n, preferred):
    # lane-dim tile: must divide n and be a multiple of 128, or equal n.
    if n <= preferred:
        return n
    for t in (preferred, 2048, 1024, 512, 256, 128):
        if t <= preferred and n % t == 0:
            return t
    return n


def transformer_layer(x, p, num_heads, *, tq_pref=256, tkv_pref=256):
    B, S, D = x.shape
    H = num_heads
    dh = D // H
    tq = _pick_seq_tile(S, tq_pref)
    tkv = _pick_seq_tile(S, tkv_pref)
    nq, nkv = S // tq, S // tkv
    bf = jnp.bfloat16

    # 1) prenorm-1 + fused QKV projection -> per-head (B, H, S, dh) bf16
    qkv_kernel = functools.partial(_ln_qkv_kernel, num_heads=H, head_dim=dh)
    q, k, v = pl.pallas_call(
        qkv_kernel,
        out_shape=[jax.ShapeDtypeStruct((B, H, S, dh), bf)] * 3,
        grid=(B, nq),
        in_specs=[pl.BlockSpec((1, tq, D), lambda b, i: (b, i, 0)),
                  _const_spec(p['g1'], 2), _const_spec(p['b1'], 2),
                  _const_spec(p['wqkv_t'], 2)],
        out_specs=[pl.BlockSpec((1, H, tq, dh), lambda b, i: (b, 0, i, 0))] * 3,
        compiler_params=pltpu.CompilerParams(
            dimension_semantics=("parallel", "parallel"),
            vmem_limit_bytes=_VMEM_LIMIT),
    )(x, p['g1'], p['b1'], p['wqkv_t'])

    # 2) flash-style causal attention over K/V tiles
    attn_kernel = functools.partial(_flash_attn_kernel, tq=tq, tkv=tkv,
                                    num_heads=H, head_dim=dh)
    attn = pl.pallas_call(
        attn_kernel,
        out_shape=jax.ShapeDtypeStruct((B, S, D), bf),
        grid=(B, nq, nkv),
        in_specs=[pl.BlockSpec((1, H, tq, dh), lambda b, i, j: (b, 0, i, 0)),
                  pl.BlockSpec((1, H, tkv, dh), lambda b, i, j: (b, 0, j, 0)),
                  pl.BlockSpec((1, H, tkv, dh), lambda b, i, j: (b, 0, j, 0))],
        out_specs=pl.BlockSpec((1, tq, D), lambda b, i, j: (b, i, 0)),
        scratch_shapes=[pltpu.VMEM((H, tq, 1), jnp.float32),
                        pltpu.VMEM((H, tq, 1), jnp.float32),
                        pltpu.VMEM((H, tq, dh), jnp.float32)],
        compiler_params=pltpu.CompilerParams(
            dimension_semantics=("parallel", "parallel", "arbitrary"),
            vmem_limit_bytes=_VMEM_LIMIT),
    )(q, k, v)

    # 3) output projection + residual + prenorm-2 + FFN + residual
    weights = [p['wo_t'], p['bo'], p['g2'], p['b2'],
               p['w1_t'], p['bf1'], p['w2_t'], p['bf2']]
    return pl.pallas_call(
        _attn_out_ffn_kernel,
        out_shape=jax.ShapeDtypeStruct((B, S, D), jnp.float32),
        grid=(B, nq),
        in_specs=[pl.BlockSpec((1, tq, D), lambda b, i: (b, i, 0)),
                  pl.BlockSpec((1, tq, D), lambda b, i: (b, i, 0))]
                 + [_const_spec(w, 2) for w in weights],
        out_specs=pl.BlockSpec((1, tq, D), lambda b, i: (b, i, 0)),
        compiler_params=pltpu.CompilerParams(
            dimension_semantics=("parallel", "parallel"),
            vmem_limit_bytes=_VMEM_LIMIT),
    )(x, attn, *weights)


def prehead_and_logits(x, gph, bph, wh_t, bh, *, tq_pref=256, tv_pref=512):
    B, S, D = x.shape
    V = wh_t.shape[1]
    tq = _pick_seq_tile(S, tq_pref)
    tv = _pick_lane_tile(V, tv_pref)
    return pl.pallas_call(
        _head_kernel,
        out_shape=jax.ShapeDtypeStruct((B, S, V), jnp.float32),
        grid=(B, S // tq, V // tv),
        in_specs=[pl.BlockSpec((1, tq, D), lambda b, i, j: (b, i, 0)),
                  _const_spec(gph, 3), _const_spec(bph, 3),
                  pl.BlockSpec((D, tv), lambda b, i, j: (0, j)),
                  pl.BlockSpec((1, tv), lambda b, i, j: (0, j))],
        out_specs=pl.BlockSpec((1, tq, tv), lambda b, i, j: (b, i, j)),
        compiler_params=pltpu.CompilerParams(
            dimension_semantics=("parallel", "parallel", "parallel"),
            vmem_limit_bytes=_VMEM_LIMIT),
    )(x, gph, bph, wh_t, bh)


def minigpt_forward(tokens, params, num_heads, *, tq=256, tkv=256, tv=512):
    B, S = tokens.shape
    tok_e = params['emb_w'][tokens]                        # embedding gather (glue)
    pos_e = params['pos_w'][:S]
    h = tok_e + pos_e[None, :, :]
    # embed_dropout / attn dropout / ffn dropout: identity (inference)
    for lp in params['layers']:
        h = transformer_layer(h, lp, num_heads, tq_pref=tq, tkv_pref=tkv)
    return prehead_and_logits(h, params['gph'], params['bph'],
                              params['wh_t'], params['bh'],
                              tq_pref=tq, tv_pref=tv)


# ----------------------------------------------------------------------------
# Deterministic parameter init (matches MiniGPT._init_weights: N(0, 0.02),
# fc2 std = 0.02/sqrt(2*num_layers), zero biases, LayerNorm gamma=1 / beta=0,
# head weight tied to the vocab embedding). Matmul weights stored in bf16,
# pre-transposed to (in, out); 1/sqrt(dk) folded into Wq.
# ----------------------------------------------------------------------------
def init_params(key, vocab_size, context_length, embed_dim, num_heads,
                feedforward_dim, num_layers):
    std = 0.02
    bf = jnp.bfloat16
    head_dim = embed_dim // num_heads
    keys = jax.random.split(key, 2 + num_layers)
    emb_w = std * jax.random.normal(keys[0], (vocab_size, embed_dim), jnp.float32)
    pos_w = std * jax.random.normal(keys[1], (context_length, embed_dim), jnp.float32)

    def heads_to_cols(w):  # (H, dh, D) -> (D, H*dh), heads concatenated on columns
        return jnp.transpose(w, (2, 0, 1)).reshape(embed_dim, embed_dim)

    layers = []
    for l in range(num_layers):
        lk = jax.random.split(keys[2 + l], 6)
        wq = std * jax.random.normal(lk[0], (num_heads, head_dim, embed_dim), jnp.float32)
        wk = std * jax.random.normal(lk[1], (num_heads, head_dim, embed_dim), jnp.float32)
        wv = std * jax.random.normal(lk[2], (num_heads, head_dim, embed_dim), jnp.float32)
        wo = std * jax.random.normal(lk[3], (embed_dim, embed_dim), jnp.float32)
        w1 = std * jax.random.normal(lk[4], (feedforward_dim, embed_dim), jnp.float32)
        w2 = (std / math.sqrt(2 * num_layers)) * jax.random.normal(
            lk[5], (embed_dim, feedforward_dim), jnp.float32)
        wq_cols = heads_to_cols(wq) / math.sqrt(head_dim)   # fold 1/sqrt(dk) into Q
        wqkv_t = jnp.concatenate(
            [wq_cols, heads_to_cols(wk), heads_to_cols(wv)], axis=1)  # (D, 3D)
        layers.append(dict(
            wqkv_t=wqkv_t.astype(bf),
            wo_t=wo.T.astype(bf),                          # (D, D)
            bo=jnp.zeros((1, embed_dim), jnp.float32),
            g1=jnp.ones((1, embed_dim), jnp.float32),
            b1=jnp.zeros((1, embed_dim), jnp.float32),
            g2=jnp.ones((1, embed_dim), jnp.float32),
            b2=jnp.zeros((1, embed_dim), jnp.float32),
            w1_t=w1.T.astype(bf),                          # (D, F)
            bf1=jnp.zeros((1, feedforward_dim), jnp.float32),
            w2_t=w2.T.astype(bf),                          # (F, D)
            bf2=jnp.zeros((1, embed_dim), jnp.float32),
        ))
    return dict(
        emb_w=emb_w, pos_w=pos_w, layers=layers,
        gph=jnp.ones((1, embed_dim), jnp.float32),
        bph=jnp.zeros((1, embed_dim), jnp.float32),
        wh_t=emb_w.T.astype(bf),                           # weight tying: head = emb^T
        bh=jnp.zeros((1, vocab_size), jnp.float32),
    )


# ----------------------------------------------------------------------------
# Pure-JAX reference: same MiniGPT structure, mirroring the kernels'
# bf16-operand / f32-accumulate matmul policy, for a tight correctness check.
# ----------------------------------------------------------------------------
def ref_forward(tokens, params, num_heads):
    bf, f32 = jnp.bfloat16, jnp.float32
    B, S = tokens.shape
    h = params['emb_w'][tokens] + params['pos_w'][:S][None]
    D = h.shape[-1]
    dh = D // num_heads
    causal = jnp.triu(jnp.ones((S, S), bool), k=1)
    bias = jnp.where(causal, jnp.float32(_MASK_BIAS), jnp.float32(0.0))
    for lp in params['layers']:
        n1 = _layernorm(h, lp['g1'], lp['b1'])
        qkv = jnp.dot(n1.astype(bf), lp['wqkv_t'], preferred_element_type=f32)
        q, k, v = qkv[..., :D], qkv[..., D:2 * D], qkv[..., 2 * D:]

        def split_heads(t):
            return t.reshape(B, S, num_heads, dh).transpose(0, 2, 1, 3).astype(bf)

        qh, kh, vh = split_heads(q), split_heads(k), split_heads(v)
        s = jnp.einsum('bhqd,bhkd->bhqk', qh, kh, preferred_element_type=f32) + bias
        p = jax.nn.softmax(s, axis=-1)
        oh = jnp.einsum('bhqk,bhkd->bhqd', p.astype(bf), vh,
                        preferred_element_type=f32)
        attn = oh.transpose(0, 2, 1, 3).reshape(B, S, D).astype(bf)
        h = h + jnp.dot(attn, lp['wo_t'], preferred_element_type=f32) + lp['bo']
        n2 = _layernorm(h, lp['g2'], lp['b2'])
        h1 = _gelu(jnp.dot(n2.astype(bf), lp['w1_t'],
                           preferred_element_type=f32) + lp['bf1'])
        h = h + jnp.dot(h1.astype(bf), lp['w2_t'],
                        preferred_element_type=f32) + lp['bf2']
    n = _layernorm(h, params['gph'], params['bph'])
    return jnp.dot(n.astype(bf), params['wh_t'],
                   preferred_element_type=f32) + params['bh']


if __name__ == "__main__":
    # Small config consistent with MiniGPT's forward; S and V are chosen so the
    # seq/kv/vocab tiling paths (incl. causal K/V-tile skipping) are exercised.
    vocab_size, context_length = 256, 32
    embed_dim, num_heads, num_layers = 32, 2, 2
    feedforward_dim = 4 * embed_dim
    B, S = 2, 32

    key = jax.random.PRNGKey(0)
    pkey, tkey = jax.random.split(key)
    params = init_params(pkey, vocab_size, context_length, embed_dim,
                         num_heads, feedforward_dim, num_layers)
    tokens = jax.random.randint(tkey, (B, S), 0, vocab_size, dtype=jnp.int32)

    # Small tiles here only to exercise multi-tile grids; real configs use the
    # 256/512 defaults in minigpt_forward.
    logits = minigpt_forward(tokens, params, num_heads, tq=16, tkv=16, tv=128)
    logits = jax.block_until_ready(logits)
    assert logits.shape == (B, S, vocab_size), logits.shape

    ref = ref_forward(tokens, params, num_heads)
    max_err = float(jnp.max(jnp.abs(logits - ref)))
    assert max_err < 2e-3, max_err

    print("KERNEL_OK")
</pallas_src>

<mosaic_0001>
module attributes {stable_mosaic.version = 11 : i64} {
  func.func @_ln_qkv_kernel(%arg0: i32, %arg1: i32, %arg2: memref<1x16x32xf32, #tpu.memory_space<vmem>>, %arg3: memref<1x32xf32, #tpu.memory_space<vmem>>, %arg4: memref<1x32xf32, #tpu.memory_space<vmem>>, %arg5: memref<32x96xbf16, #tpu.memory_space<vmem>>, %arg6: memref<1x2x16x16xbf16, #tpu.memory_space<vmem>>, %arg7: memref<1x2x16x16xbf16, #tpu.memory_space<vmem>>, %arg8: memref<1x2x16x16xbf16, #tpu.memory_space<vmem>>) attributes {dimension_semantics = [#tpu.dimension_semantics<parallel>, #tpu.dimension_semantics<parallel>], iteration_bounds = array<i64: 2, 2>, scalar_prefetch = 0 : i64, scratch_operands = 0 : i64, tpu.core_type = #tpu.core_type<tc>, window_params = [{transform_indices = @transform_0, window_bounds = array<i64: 1, 16, 32>}, {pipeline_mode = #tpu.pipeline_mode<synchronous>, transform_indices = @transform_1, window_bounds = array<i64: 1, 32>}, {pipeline_mode = #tpu.pipeline_mode<synchronous>, transform_indices = @transform_2, window_bounds = array<i64: 1, 32>}, {pipeline_mode = #tpu.pipeline_mode<synchronous>, transform_indices = @transform_3, window_bounds = array<i64: 32, 96>}, {transform_indices = @transform_4, window_bounds = array<i64: 1, 2, 16, 16>}, {transform_indices = @transform_5, window_bounds = array<i64: 1, 2, 16, 16>}, {transform_indices = @transform_6, window_bounds = array<i64: 1, 2, 16, 16>}]} {
    %c0 = arith.constant 0 : index
    %c0_0 = arith.constant 0 : index
    %c0_1 = arith.constant 0 : index
    %0 = vector.load %arg2[%c0, %c0_0, %c0_1] : memref<1x16x32xf32, #tpu.memory_space<vmem>>, vector<1x16x32xf32>
    %1 = vector.shape_cast %0 : vector<1x16x32xf32> to vector<16x32xf32>
    %c0_2 = arith.constant 0 : index
    %c0_3 = arith.constant 0 : index
    %2 = vector.load %arg3[%c0_2, %c0_3] : memref<1x32xf32, #tpu.memory_space<vmem>>, vector<1x32xf32>
    %c0_4 = arith.constant 0 : index
    %c0_5 = arith.constant 0 : index
    %3 = vector.load %arg4[%c0_4, %c0_5] : memref<1x32xf32, #tpu.memory_space<vmem>>, vector<1x32xf32>
    %cst = arith.constant dense<0.000000e+00> : vector<16xf32>
    %4 = vector.multi_reduction <add>, %1, %cst [1] : vector<16x32xf32> to vector<16xf32>
    %5 = vector.shape_cast %4 : vector<16xf32> to vector<16x1xf32>
    %cst_6 = arith.constant 3.200000e+01 : f32
    %6 = vector.broadcast %cst_6 : f32 to vector<16x1xf32>
    %7 = arith.divf %5, %6 : vector<16x1xf32>
    %8 = vector.broadcast %7 : vector<16x1xf32> to vector<16x32xf32>
    %9 = arith.subf %1, %8 : vector<16x32xf32>
    %10 = arith.mulf %9, %9 : vector<16x32xf32>
    %cst_7 = arith.constant dense<0.000000e+00> : vector<16xf32>
    %11 = vector.multi_reduction <add>, %10, %cst_7 [1] : vector<16x32xf32> to vector<16xf32>
    %12 = vector.shape_cast %11 : vector<16xf32> to vector<16x1xf32>
    %cst_8 = arith.constant 3.200000e+01 : f32
    %13 = vector.broadcast %cst_8 : f32 to vector<16x1xf32>
    %14 = arith.divf %12, %13 : vector<16x1xf32>
    %15 = vector.broadcast %7 : vector<16x1xf32> to vector<16x32xf32>
    %16 = arith.subf %1, %15 : vector<16x32xf32>
    %17 = vector.broadcast %2 : vector<1x32xf32> to vector<16x32xf32>
    %18 = arith.mulf %17, %16 : vector<16x32xf32>
    %cst_9 = arith.constant 9.99999974E-6 : f32
    %19 = vector.broadcast %cst_9 : f32 to vector<16x1xf32>
    %20 = arith.addf %14, %19 : vector<16x1xf32>
    %21 = math.sqrt %20 : vector<16x1xf32>
    %22 = vector.broadcast %21 : vector<16x1xf32> to vector<16x32xf32>
    %23 = arith.divf %18, %22 : vector<16x32xf32>
    %24 = vector.broadcast %3 : vector<1x32xf32> to vector<16x32xf32>
    %25 = arith.addf %23, %24 : vector<16x32xf32>
    %26 = arith.truncf %25 : vector<16x32xf32> to vector<16x32xbf16>
    %c0_10 = arith.constant 0 : index
    %c0_11 = arith.constant 0 : index
    %27 = vector.load %arg5[%c0_10, %c0_11] : memref<32x96xbf16, #tpu.memory_space<vmem>>, vector<32x96xbf16>
    %cst_12 = arith.constant dense<0.000000e+00> : vector<16x96xf32>
    %28 = tpu.matmul %26, %27, %cst_12 {dimension_numbers = #tpu.dot_dimension_numbers<[1], [0], [0], [1], [0, 0, 1, 1], [], []>} : vector<16x32xbf16>, vector<32x96xbf16>, vector<16x96xf32> -> vector<16x96xf32>
    %29 = vector.extract_strided_slice %28 {offsets = [0, 0], sizes = [16, 16], strides = [1, 1]} : vector<16x96xf32> to vector<16x16xf32>
    %30 = arith.truncf %29 : vector<16x16xf32> to vector<16x16xbf16>
    %c0_13 = arith.constant 0 : index
    %c0_14 = arith.constant 0 : index
    %c0_15 = arith.constant 0 : index
    %c0_16 = arith.constant 0 : index
    %31 = vector.load %arg6[%c0_13, %c0_14, %c0_15, %c0_16] : memref<1x2x16x16xbf16, #tpu.memory_space<vmem>>, vector<1x1x16x16xbf16>
    %32 = vector.shape_cast %31 : vector<1x1x16x16xbf16> to vector<16x16xbf16>
    %33 = vector.shape_cast %30 : vector<16x16xbf16> to vector<1x1x16x16xbf16>
    tpu.vector_store %arg6[%c0_13, %c0_14, %c0_15, %c0_16], %33 {strides = array<i32>} : memref<1x2x16x16xbf16, #tpu.memory_space<vmem>>, vector<1x1x16x16xbf16>,
    %34 = vector.extract_strided_slice %28 {offsets = [0, 32], sizes = [16, 16], strides = [1, 1]} : vector<16x96xf32> to vector<16x16xf32>
    %35 = arith.truncf %34 : vector<16x16xf32> to vector<16x16xbf16>
    %c0_17 = arith.constant 0 : index
    %c0_18 = arith.constant 0 : index
    %c0_19 = arith.constant 0 : index
    %c0_20 = arith.constant 0 : index
    %36 = vector.load %arg7[%c0_17, %c0_18, %c0_19, %c0_20] : memref<1x2x16x16xbf16, #tpu.memory_space<vmem>>, vector<1x1x16x16xbf16>
    %37 = vector.shape_cast %36 : vector<1x1x16x16xbf16> to vector<16x16xbf16>
    %38 = vector.shape_cast %35 : vector<16x16xbf16> to vector<1x1x16x16xbf16>
    tpu.vector_store %arg7[%c0_17, %c0_18, %c0_19, %c0_20], %38 {strides = array<i32>} : memref<1x2x16x16xbf16, #tpu.memory_space<vmem>>, vector<1x1x16x16xbf16>,
    %39 = vector.extract_strided_slice %28 {offsets = [0, 64], sizes = [16, 16], strides = [1, 1]} : vector<16x96xf32> to vector<16x16xf32>
    %40 = arith.truncf %39 : vector<16x16xf32> to vector<16x16xbf16>
    %c0_21 = arith.constant 0 : index
    %c0_22 = arith.constant 0 : index
    %c0_23 = arith.constant 0 : index
    %c0_24 = arith.constant 0 : index
    %41 = vector.load %arg8[%c0_21, %c0_22, %c0_23, %c0_24] : memref<1x2x16x16xbf16, #tpu.memory_space<vmem>>, vector<1x1x16x16xbf16>
    %42 = vector.shape_cast %41 : vector<1x1x16x16xbf16> to vector<16x16xbf16>
    %43 = vector.shape_cast %40 : vector<16x16xbf16> to vector<1x1x16x16xbf16>
    tpu.vector_store %arg8[%c0_21, %c0_22, %c0_23, %c0_24], %43 {strides = array<i32>} : memref<1x2x16x16xbf16, #tpu.memory_space<vmem>>, vector<1x1x16x16xbf16>,
    %44 = vector.extract_strided_slice %28 {offsets = [0, 16], sizes = [16, 16], strides = [1, 1]} : vector<16x96xf32> to vector<16x16xf32>
    %45 = arith.truncf %44 : vector<16x16xf32> to vector<16x16xbf16>
    %c0_25 = arith.constant 0 : index
    %c1 = arith.constant 1 : index
    %c0_26 = arith.constant 0 : index
    %c0_27 = arith.constant 0 : index
    %46 = vector.load %arg6[%c0_25, %c1, %c0_26, %c0_27] : memref<1x2x16x16xbf16, #tpu.memory_space<vmem>>, vector<1x1x16x16xbf16>
    %47 = vector.shape_cast %46 : vector<1x1x16x16xbf16> to vector<16x16xbf16>
    %48 = vector.shape_cast %45 : vector<16x16xbf16> to vector<1x1x16x16xbf16>
    tpu.vector_store %arg6[%c0_25, %c1, %c0_26, %c0_27], %48 {strides = array<i32>} : memref<1x2x16x16xbf16, #tpu.memory_space<vmem>>, vector<1x1x16x16xbf16>,
    %49 = vector.extract_strided_slice %28 {offsets = [0, 48], sizes = [16, 16], strides = [1, 1]} : vector<16x96xf32> to vector<16x16xf32>
    %50 = arith.truncf %49 : vector<16x16xf32> to vector<16x16xbf16>
    %c0_28 = arith.constant 0 : index
    %c1_29 = arith.constant 1 : index
    %c0_30 = arith.constant 0 : index
    %c0_31 = arith.constant 0 : index
    %51 = vector.load %arg7[%c0_28, %c1_29, %c0_30, %c0_31] : memref<1x2x16x16xbf16, #tpu.memory_space<vmem>>, vector<1x1x16x16xbf16>
    %52 = vector.shape_cast %51 : vector<1x1x16x16xbf16> to vector<16x16xbf16>
    %53 = vector.shape_cast %50 : vector<16x16xbf16> to vector<1x1x16x16xbf16>
    tpu.vector_store %arg7[%c0_28, %c1_29, %c0_30, %c0_31], %53 {strides = array<i32>} : memref<1x2x16x16xbf16, #tpu.memory_space<vmem>>, vector<1x1x16x16xbf16>,
    %54 = vector.extract_strided_slice %28 {offsets = [0, 80], sizes = [16, 16], strides = [1, 1]} : vector<16x96xf32> to vector<16x16xf32>
    %55 = arith.truncf %54 : vector<16x16xf32> to vector<16x16xbf16>
    %c0_32 = arith.constant 0 : index
    %c1_33 = arith.constant 1 : index
    %c0_34 = arith.constant 0 : index
    %c0_35 = arith.constant 0 : index
    %56 = vector.load %arg8[%c0_32, %c1_33, %c0_34, %c0_35] : memref<1x2x16x16xbf16, #tpu.memory_space<vmem>>, vector<1x1x16x16xbf16>
    %57 = vector.shape_cast %56 : vector<1x1x16x16xbf16> to vector<16x16xbf16>
    %58 = vector.shape_cast %55 : vector<16x16xbf16> to vector<1x1x16x16xbf16>
    tpu.vector_store %arg8[%c0_32, %c1_33, %c0_34, %c0_35], %58 {strides = array<i32>} : memref<1x2x16x16xbf16, #tpu.memory_space<vmem>>, vector<1x1x16x16xbf16>,
    return
  }
  func.func @transform_0(%arg0: i32, %arg1: i32) -> (i32, i32, i32) {
    %c0_i32 = arith.constant 0 : i32
    %c0_i32_0 = arith.constant 0 : i32
    return %arg0, %arg1, %c0_i32 : i32, i32, i32
  }
  func.func @transform_1(%arg0: i32, %arg1: i32) -> (i32, i32) {
    %c0_i32 = arith.constant 0 : i32
    %c0_i32_0 = arith.constant 0 : i32
    %c0_i32_1 = arith.constant 0 : i32
    return %c0_i32, %c0_i32_0 : i32, i32
  }
  func.func @transform_2(%arg0: i32, %arg1: i32) -> (i32, i32) {
    %c0_i32 = arith.constant 0 : i32
    %c0_i32_0 = arith.constant 0 : i32
    %c0_i32_1 = arith.constant 0 : i32
    return %c0_i32, %c0_i32_0 : i32, i32
  }
  func.func @transform_3(%arg0: i32, %arg1: i32) -> (i32, i32) {
    %c0_i32 = arith.constant 0 : i32
    %c0_i32_0 = arith.constant 0 : i32
    %c0_i32_1 = arith.constant 0 : i32
    return %c0_i32, %c0_i32_0 : i32, i32
  }
  func.func @transform_4(%arg0: i32, %arg1: i32) -> (i32, i32, i32, i32) {
    %c0_i32 = arith.constant 0 : i32
    %c0_i32_0 = arith.constant 0 : i32
    %c0_i32_1 = arith.constant 0 : i32
    return %arg0, %c0_i32, %arg1, %c0_i32_0 : i32, i32, i32, i32
  }
  func.func @transform_5(%arg0: i32, %arg1: i32) -> (i32, i32, i32, i32) {
    %c0_i32 = arith.constant 0 : i32
    %c0_i32_0 = arith.constant 0 : i32
    %c0_i32_1 = arith.constant 0 : i32
    return %arg0, %c0_i32, %arg1, %c0_i32_0 : i32, i32, i32, i32
  }
  func.func @transform_6(%arg0: i32, %arg1: i32) -> (i32, i32, i32, i32) {
    %c0_i32 = arith.constant 0 : i32
    %c0_i32_0 = arith.constant 0 : i32
    %c0_i32_1 = arith.constant 0 : i32
    return %arg0, %c0_i32, %arg1, %c0_i32_0 : i32, i32, i32, i32
  }
}

</mosaic_0001>

<llo_original>
// kernel: tpu_custom_call.1
$region0: #{tpu_custom_call.1}
  #allocation0 [shape = 'u32[]', space=smem, size = 0x4, offset = 0x4, fixed_abs, tag = 'smem constant byte address 0x4 - core index']
  #allocation1 [shape = 'u32[144,128]{1,0:T(1,128)}', space=vmem, size = 0x12000, scoped, tag = 'internal scratch']
  %s0 = inlined_call_operand.hbm [shape: f32[2,32,32], index: 0, kind: input, shape index: {}]
  %s1 = inlined_call_operand.vmem [shape: f32[1,32], index: 1, kind: input, shape index: {}]
  %s2 = inlined_call_operand.vmem [shape: f32[1,32], index: 2, kind: input, shape index: {}]
  %s3 = inlined_call_operand.hbm [shape: bf16[32,96], index: 3, kind: input, shape index: {}]
  %s4 = inlined_call_operand.vmem [shape: bf16[2,2,32,16], index: 4, kind: output, shape index: {0}]
  %s5 = inlined_call_operand.vmem [shape: bf16[2,2,32,16], index: 5, kind: output, shape index: {1}]
  %s6 = inlined_call_operand.vmem [shape: bf16[2,2,32,16], index: 6, kind: output, shape index: {2}]
  %7 = xla_tuple %s4, %s5, %s6
  %s8 = sld [smem:[#allocation0]]
  $region184: #{tpu_custom_call.1} parent=0
    _
  %s10 = ssub.s32 1, %s8
  %s11 = scalar_select 0, %s10, %s8
  $region1: #{tpu_custom_call.1} parent=0
    #allocation2 [shape = 'u8[16384]{0}', space=vmem, size = 0x4000, scoped, tag = 'input window, operand 0']
    #allocation3 [shape = 's32[2]{0}', space=sflag, size = 0x8, scoped, tag = 'scoped memory for tpu_custom_call.1']
    #allocation4 [shape = 'u8[8192]{0}', space=vmem, size = 0x2000, scoped, tag = 'input window, operand 3, single buffered']
    #allocation5 [shape = 's32[1]{0}', space=sflag, size = 0x4, scoped, tag = 'scoped memory for tpu_custom_call.1']
    #allocation6 [shape = 'u8[16384]{0}', space=vmem, size = 0x4000, scoped, tag = 'output window, operand 0']
    #allocation7 [shape = 'u8[16384]{0}', space=vmem, size = 0x4000, scoped, tag = 'output window, operand 1']
    #allocation8 [shape = 'u8[16384]{0}', space=vmem, size = 0x4000, scoped, tag = 'output window, operand 2']
    %12 = vsyncpa [#allocation3], 0
    %s13 = scalar_lea.sflag [#allocation3], 1
    %14 = vsyncpa %s13, 0
    %15 = vsyncpa [#allocation5], 0
    loop: start=0, step=1, limit=6
    $region2: #{tpu_custom_call.1} parent=1 // loop_pre_header
      _
    $region3: #{tpu_custom_call.1} parent=1 // loop_header
      %s17 = sphi 0, %s21
      %p18 = scmp.ge.s32.totalorder %s17, 6
      %s24 = sphi 0, %s36
      %s25 = sphi 0, %s32
      %s26 = sphi 0, %s24
      %s27 = sphi 0, %s25
      %s28 = sphi 0, %s26
      %s29 = sphi 0, %s27
      %s41 = sphi 0, %s43
      %s44 = sphi 0, %s41
      %s45 = sphi 0, %s44
      %s61 = sphi 0, %s45
      %s65 = sphi 0, %s65
      %s67 = sphi 0, %s65
      %s68 = sphi 0, %s67
      %s82 = sphi 0, %s68
      %s86 = sphi 0, %s86
      %s88 = sphi 0, %s86
      %s89 = sphi 0, %s88
      %s103 = sphi 0, %s89
      %s107 = sphi 0, %s107
      %s109 = sphi 0, %s107
      %s110 = sphi 0, %s109
      %s124 = sphi 0, %s110
      %s132 = sphi 0, %s134
      %s135 = sphi 0, %s132
      %s136 = sphi 0, %s135
      %s152 = sphi 0, %s136
      %s160 = sphi 0, %s162
      %s163 = sphi 0, %s160
      %s164 = sphi 0, %s163
      %s180 = sphi 0, %s164
      %s188 = sphi 0, %s190
      %s191 = sphi 0, %s188
      %s192 = sphi 0, %s191
      %s208 = sphi 0, %s192
    $region4: #{tpu_custom_call.1} parent=1 // loop_header_branch
      %20 = sbr.rel (%p18) target = $region8
    $region5: #{tpu_custom_call.1} parent=1 // loop_body
      %s22 = ssub.s32 %s17, 1
      %s23 = ssub.s32 %s17, 2
      %s30 = sadd.s32 1, %s25
      %p31 = scmp.ge.s32.totalorder %s30, 2
      %s32 = scalar_select %p31, 0, %s30
      %s33 = sadd.s32 1, %s24
      %s34 = scalar_select %p31, %s33, %s24
      %p35 = scmp.ge.s32.totalorder %s34, 2
      %s36 = scalar_select %p35, 0, %s34
      %s37 = ssub.s32 %s24, %s36
      %s38 = ssub.s32 %s25, %s32
      %s39 = sor.u32 %s37, %s38
      %p40 = scmp.eq.s32.totalorder %s39, 0
      %s42 = sadd.s32 %s41, 1
      %s43 = scalar_select %p40, %s41, %s42
      %p46 = pneg %p40
      %p47 = scmp.eq.s32.totalorder %s17, 3
      %p48 = por %p46, %p47
      %p49 = scmp.ne.s32.totalorder %s41, %s44
      %p50 = scmp.eq.s32.totalorder %s17, 0
      %p51 = por %p49, %p50
      %p52 = scmp.ne.s32.totalorder %s41, %s44
      %p53 = scmp.eq.s32.totalorder %s22, 3
      %p54 = por %p52, %p53
      %p55 = scmp.ne.s32.totalorder %s44, %s45
      %p56 = scmp.eq.s32.totalorder %s22, 0
      %p57 = por %p55, %p56
      %p58 = scmp.ne.s32.totalorder %s44, %s45
      %p59 = scmp.eq.s32.totalorder %s23, 3
      %p60 = por %p58, %p59
      %p62 = scmp.ne.s32.totalorder %s45, %s61
      %p63 = scmp.eq.s32.totalorder %s23, 0
      %p64 = por %p62, %p63
      %s66 = sadd.s32 %s65, 1
      %p69 = scmp.eq.s32.totalorder %s17, 3
      %p70 = scmp.ne.s32.totalorder %s65, %s67
      %p71 = scmp.eq.s32.totalorder %s17, 0
      %p72 = por %p70, %p71
      %p73 = scmp.ne.s32.totalorder %s65, %s67
      %p74 = scmp.eq.s32.totalorder %s22, 3
      %p75 = por %p73, %p74
      %p76 = scmp.ne.s32.totalorder %s67, %s68
      %p77 = scmp.eq.s32.totalorder %s22, 0
      %p78 = por %p76, %p77
      %p79 = scmp.ne.s32.totalorder %s67, %s68
      %p80 = scmp.eq.s32.totalorder %s23, 3
      %p81 = por %p79, %p80
      %p83 = scmp.ne.s32.totalorder %s68, %s82
      %p84 = scmp.eq.s32.totalorder %s23, 0
      %p85 = por %p83, %p84
      %s87 = sadd.s32 %s86, 1
      %p90 = scmp.eq.s32.totalorder %s17, 3
      %p91 = scmp.ne.s32.totalorder %s86, %s88
      %p92 = scmp.eq.s32.totalorder %s17, 0
      %p93 = por %p91, %p92
      %p94 = scmp.ne.s32.totalorder %s86, %s88
      %p95 = scmp.eq.s32.totalorder %s22, 3
      %p96 = por %p94, %p95
      %p97 = scmp.ne.s32.totalorder %s88, %s89
      %p98 = scmp.eq.s32.totalorder %s22, 0
      %p99 = por %p97, %p98
      %p100 = scmp.ne.s32.totalorder %s88, %s89
      %p101 = scmp.eq.s32.totalorder %s23, 3
      %p102 = por %p100, %p101
      %p104 = scmp.ne.s32.totalorder %s89, %s103
      %p105 = scmp.eq.s32.totalorder %s23, 0
      %p106 = por %p104, %p105
      %s108 = sadd.s32 %s107, 1
      %p111 = scmp.eq.s32.totalorder %s17, 3
      %p112 = scmp.ne.s32.totalorder %s107, %s109
      %p113 = scmp.eq.s32.totalorder %s17, 0
      %p114 = por %p112, %p113
      %p115 = scmp.ne.s32.totalorder %s107, %s109
      %p116 = scmp.eq.s32.totalorder %s22, 3
      %p117 = por %p115, %p116
      %p118 = scmp.ne.s32.totalorder %s109, %s110
      %p119 = scmp.eq.s32.totalorder %s22, 0
      %p120 = por %p118, %p119
      %p121 = scmp.ne.s32.totalorder %s109, %s110
      %p122 = scmp.eq.s32.totalorder %s23, 3
      %p123 = por %p121, %p122
      %p125 = scmp.ne.s32.totalorder %s110, %s124
      %p126 = scmp.eq.s32.totalorder %s23, 0
      %p127 = por %p125, %p126
      %s128 = ssub.s32 %s24, %s36
      %s129 = ssub.s32 %s25, %s32
      %s130 = sor.u32 %s128, %s129
      %p131 = scmp.eq.s32.totalorder %s130, 0
      %s133 = sadd.s32 %s132, 1
      %s134 = scalar_select %p131, %s132, %s133
      %p137 = pneg %p131
      %p138 = scmp.eq.s32.totalorder %s17, 3
      %p139 = por %p137, %p138
      %p140 = scmp.ne.s32.totalorder %s132, %s135
      %p141 = scmp.eq.s32.totalorder %s17, 0
      %p142 = por %p140, %p141
      %p143 = scmp.ne.s32.totalorder %s132, %s135
      %p144 = scmp.eq.s32.totalorder %s22, 3
      %p145 = por %p143, %p144
      %p146 = scmp.ne.s32.totalorder %s135, %s136
      %p147 = scmp.eq.s32.totalorder %s22, 0
      %p148 = por %p146, %p147
      %p149 = scmp.ne.s32.totalorder %s135, %s136
      %p150 = scmp.eq.s32.totalorder %s23, 3
      %p151 = por %p149, %p150
      %p153 = scmp.ne.s32.totalorder %s136, %s152
      %p154 = scmp.eq.s32.totalorder %s23, 0
      %p155 = por %p153, %p154
      %s156 = ssub.s32 %s24, %s36
      %s157 = ssub.s32 %s25, %s32
      %s158 = sor.u32 %s156, %s157
      %p159 = scmp.eq.s32.totalorder %s158, 0
      %s161 = sadd.s32 %s160, 1
      %s162 = scalar_select %p159, %s160, %s161
      %p165 = pneg %p159
      %p166 = scmp.eq.s32.totalorder %s17, 3
      %p167 = por %p165, %p166
      %p168 = scmp.ne.s32.totalorder %s160, %s163
      %p169 = scmp.eq.s32.totalorder %s17, 0
      %p170 = por %p168, %p169
      %p171 = scmp.ne.s32.totalorder %s160, %s163
      %p172 = scmp.eq.s32.totalorder %s22, 3
      %p173 = por %p171, %p172
      %p174 = scmp.ne.s32.totalorder %s163, %s164
      %p175 = scmp.eq.s32.totalorder %s22, 0
      %p176 = por %p174, %p175
      %p177 = scmp.ne.s32.totalorder %s163, %s164
      %p178 = scmp.eq.s32.totalorder %s23, 3
      %p179 = por %p177, %p178
      %p181 = scmp.ne.s32.totalorder %s164, %s180
      %p182 = scmp.eq.s32.totalorder %s23, 0
      %p183 = por %p181, %p182
      %s184 = ssub.s32 %s24, %s36
      %s185 = ssub.s32 %s25, %s32
      %s186 = sor.u32 %s184, %s185
      %p187 = scmp.eq.s32.totalorder %s186, 0
      %s189 = sadd.s32 %s188, 1
      %s190 = scalar_select %p187, %s188, %s189
      %p193 = pneg %p187
      %p194 = scmp.eq.s32.totalorder %s17, 3
      %p195 = por %p193, %p194
      %p196 = scmp.ne.s32.totalorder %s188, %s191
      %p197 = scmp.eq.s32.totalorder %s17, 0
      %p198 = por %p196, %p197
      %p199 = scmp.ne.s32.totalorder %s188, %s191
      %p200 = scmp.eq.s32.totalorder %s22, 3
      %p201 = por %p199, %p200
      %p202 = scmp.ne.s32.totalorder %s191, %s192
      %p203 = scmp.eq.s32.totalorder %s22, 0
      %p204 = por %p202, %p203
      %p205 = scmp.ne.s32.totalorder %s191, %s192
      %p206 = scmp.eq.s32.totalorder %s23, 3
      %p207 = por %p205, %p206
      %p209 = scmp.ne.s32.totalorder %s192, %s208
      %p210 = scmp.eq.s32.totalorder %s23, 0
      %p211 = por %p209, %p210
      %p212 = scmp.le.s32.totalorder 1, %s17
      %p213 = scmp.lt.s32.totalorder %s17, 5
      %p214 = pnand %p212, %p213
      %p215 = pneg %p214
      // Predicated region
      $region9: #{tpu_custom_call.1} parent=5 // pred_check
        _
      $region10: #{tpu_custom_call.1} parent=5 // pred_check_branch
        %217 = sbr.rel (%p214) target = $region12
      $region11: #{tpu_custom_call.1} parent=5 // pred_region
        %s218 = ssub.s32 %s17, 1
        // Predicated region
        $region13: #{tpu_custom_call.1} parent=11 // pred_check
          %p219 = pneg %p78
        $region14: #{tpu_custom_call.1} parent=11 // pred_check_branch
          %221 = sbr.rel (%p219) target = $region16
        $region15: #{tpu_custom_call.1} parent=11 // pred_region
          _
        $region16: #{tpu_custom_call.1} parent=11 // pred_fallthru
          _
        // Predicated region
        $region17: #{tpu_custom_call.1} parent=11 // pred_check
          %p222 = pneg %p99
        $region18: #{tpu_custom_call.1} parent=11 // pred_check_branch
          %224 = sbr.rel (%p222) target = $region20
        $region19: #{tpu_custom_call.1} parent=11 // pred_region
          _
        $region20: #{tpu_custom_call.1} parent=11 // pred_fallthru
          _
        // Predicated region
        $region21: #{tpu_custom_call.1} parent=11 // pred_check
          %p225 = pneg %p120
        $region22: #{tpu_custom_call.1} parent=11 // pred_check_branch
          %227 = sbr.rel (%p225) target = $region24
        $region23: #{tpu_custom_call.1} parent=11 // pred_region
          %s229 = ssub.s32 256, 256
          %230 = vsyncadd [#allocation5], %s229
          %s231 = sshll.u32 [#allocation4], 4
          %s232 = int_to_ptr.vmem [resolvable:$true] %s231
          %237 = dma.hbm_to_vmem [thread:$0]  %s3, 256, %s232, [#allocation5], 64, 64, 4
        $region24: #{tpu_custom_call.1} parent=11 // pred_fallthru
          _
      $region12: #{tpu_custom_call.1} parent=5 // pred_fallthru
        _
      %p238 = scmp.lt.s32.totalorder %s17, 4
      // Predicated region
      $region25: #{tpu_custom_call.1} parent=5 // pred_check
        %p239 = pneg %p238
      $region26: #{tpu_custom_call.1} parent=5 // pred_check_branch
        %241 = sbr.rel (%p239) target = $region28
      $region27: #{tpu_custom_call.1} parent=5 // pred_region
        // Predicated region
        $region29: #{tpu_custom_call.1} parent=27 // pred_check
          %p242 = pneg %p51
        $region30: #{tpu_custom_call.1} parent=27 // pred_check_branch
          %244 = sbr.rel (%p242) target = $region32
        $region31: #{tpu_custom_call.1} parent=27 // pred_region
          %s245 = sand.u32 %s41, 1
          %s246 = scalar_lea.sflag [#allocation3], %s245
          %s247 = sand.u32 %s41, 1
          %s248 = smul.addr %s247, 16
          %s249 = scalar_lea.vmem [#allocation2], %s248
          %s250 = smul.u32 2, %s25
          %s252 = ssub.s32 256, 256
          %253 = vsyncadd %s246, %s252
          %s254 = smul.addr %s24, 4
          %s255 = sadd.s32 %s250, %s254
          %s256 = smul.addr %s255, 128
          %s257 = scalar_lea.hbm %s0, %s256
          %s258 = sshll.u32 %s249, 4
          %s259 = int_to_ptr.vmem [resolvable:$true] %s258
          %264 = dma.hbm_to_vmem [thread:$0]  %s257, 256, %s259, %s246, 128, 128, 8
        $region32: #{tpu_custom_call.1} parent=27 // pred_fallthru
          _
      $region28: #{tpu_custom_call.1} parent=5 // pred_fallthru
        _
      %p265 = scmp.le.s32.totalorder 1, %s17
      %p266 = scmp.lt.s32.totalorder %s17, 5
      %p267 = pnand %p265, %p266
      %p268 = pneg %p267
      // Predicated region
      $region33: #{tpu_custom_call.1} parent=5 // pred_check
        _
      $region34: #{tpu_custom_call.1} parent=5 // pred_check_branch
        %270 = sbr.rel (%p267) target = $region36
      $region35: #{tpu_custom_call.1} parent=5 // pred_region
        %s271 = ssub.s32 %s17, 1
        %s272 = sand.u32 %s44, 1
        %s273 = scalar_lea.sflag [#allocation3], %s272
        %s274 = sand.u32 %s44, 1
        %s275 = smul.addr %s274, 16
        %s276 = scalar_lea.vmem [#allocation2], %s275
        // Predicated region
        $region37: #{tpu_custom_call.1} parent=35 // pred_check
          %p277 = pneg %p57
        $region38: #{tpu_custom_call.1} parent=35 // pred_check_branch
          %279 = sbr.rel (%p277) target = $region40
        $region39: #{tpu_custom_call.1} parent=35 // pred_region
          %280 = dma.done %s273, 256
        $region40: #{tpu_custom_call.1} parent=35 // pred_fallthru
          _
        // Predicated region
        $region41: #{tpu_custom_call.1} parent=35 // pred_check
          %p281 = pneg %p120
        $region42: #{tpu_custom_call.1} parent=35 // pred_check_branch
          %283 = sbr.rel (%p281) target = $region44
        $region43: #{tpu_custom_call.1} parent=35 // pred_region
          %284 = dma.done [#allocation5], 256
        $region44: #{tpu_custom_call.1} parent=35 // pred_fallthru
          _
        %s285 = sand.u32 %s44, 1
        %s286 = scalar_lea.sflag [#allocation3], %s285
        %s287 = sand.u32 %s44, 1
        %s288 = smul.addr %s287, 16
        %s289 = scalar_lea.vmem [#allocation2], %s288
        %p290 = pneg %p57
        %p291 = pneg %p54
        %p292 = pneg %p78
        %p293 = pneg %p75
        %p294 = pneg %p99
        %p295 = pneg %p96
        %p296 = pneg %p120
        %p297 = pneg %p117
        %p298 = pneg %p148
        %p299 = pneg %p145
        %s300 = sand.u32 %s135, 1
        %s301 = sand.u32 %s135, 1
        %s302 = smul.addr %s301, 16
        %s303 = scalar_lea.vmem [#allocation6], %s302
        %p304 = pneg %p176
        %p305 = pneg %p173
        %s306 = sand.u32 %s163, 1
        %s307 = sand.u32 %s163, 1
        %s308 = smul.addr %s307, 16
        %s309 = scalar_lea.vmem [#allocation7], %s308
        %p310 = pneg %p204
        %p311 = pneg %p201
        %s312 = sand.u32 %s191, 1
        %s313 = sand.u32 %s191, 1
        %s314 = smul.addr %s313, 16
        %s315 = scalar_lea.vmem [#allocation8], %s314
        %s316 = smul.u32 2, %s27
        %s317 = smul.u32 2, %s27
        %s318 = smul.u32 2, %s27
        %s319 = smul.u32 2, %s27
        %v321 = vld [vmem:[%s276] sm:$0xff]
        %v322 = vld [vmem:[%s276 + $0x8] sm:$0xff]
        %v323 = vld [vmem:[%s1] sm:$0x1]
        %v324 = vld [vmem:[%s2] sm:$0x1]
        %vm325 = vcmask 261120
        %v326 = vsel %vm325, %v321, 0.0
        %327 = vadd.xlane.f32.xlu0 %v326
        %v328 = vpop.xlane.xlu0 %327
        %v329 = vsel %vm325, %v322, 0.0
        %330 = vadd.xlane.f32.xlu0 %v329
        %v331 = vpop.xlane.xlu0 %330
        %v332 = vrcp.pop 32.0
        %v333 = vmul.f32 %v328, %v332
        %v334 = vmul.f32 %v331, %v332
        %v335 = vsub.f32 %v321, %v333
        %v336 = vsub.f32 %v322, %v334
        %v337 = vmul.f32 %v335, %v335
        %v338 = vmul.f32 %v336, %v336
        %v339 = vsel %vm325, %v337, 0.0
        %340 = vadd.xlane.f32.xlu0 %v339
        %v341 = vpop.xlane.xlu0 %340
        %v342 = vsel %vm325, %v338, 0.0
        %343 = vadd.xlane.f32.xlu0 %v342
        %v344 = vpop.xlane.xlu0 %343
        %v345 = vmul.f32 %v341, %v332
        %v346 = vmul.f32 %v344, %v332
        %v348 = vlaneseq
        %v349 = vshrl.u32 %v348, 7
        %v350 = vsub.s32 0, %v349
        %v351 = vrot.slane %v323, %v350
        %v353 = vmul.f32 %v351, %v335
        %v354 = vmul.f32 %v351, %v336
        %v355 = vadd.f32 %v345, 1e-05
        %v356 = vadd.f32 %v346, 1e-05
        %v357 = vrsqrt.pop %v355
        %v358 = vmul.f32 %v355, %v357
        %vm359 = vcmp.eq.f32.partialorder %v355, inf
        %v360 = vsel %vm359, %v355, %v358
        %vm361 = vcmp.eq.f32.partialorder %v355, 0.0
        %v362 = vand.u32 %v355, 2147483648
        %v363 = vsel %vm361, %v362, %v360
        %v364 = vrsqrt.pop %v356
        %v365 = vmul.f32 %v356, %v364
        %vm366 = vcmp.eq.f32.partialorder %v356, inf
        %v367 = vsel %vm366, %v356, %v365
        %vm368 = vcmp.eq.f32.partialorder %v356, 0.0
        %v369 = vand.u32 %v356, 2147483648
        %v370 = vsel %vm368, %v369, %v367
        %v371 = vrcp.pop %v363
        %v372 = vmul.f32 %v353, %v371
        %v373 = vrcp.pop %v370
        %v374 = vmul.f32 %v354, %v373
        %v376 = vlaneseq
        %v377 = vshrl.u32 %v376, 7
        %v378 = vsub.s32 0, %v377
        %v379 = vrot.slane %v324, %v378
        %v381 = vadd.f32 %v372, %v379
        %v382 = vadd.f32 %v374, %v379
        %v383 = vpack.c.bf16 %v382, %v381
        %v384 = vld [vmem:[#allocation4] sm:$0xf]
        %v385 = vld [vmem:[#allocation4 + $0x4] sm:$0xf]
        %v386 = vld [vmem:[#allocation4 + $0x8] sm:$0xf]
        %v387 = vld [vmem:[#allocation4 + $0xc] sm:$0xf]
        %v392 = vunpack.c.l.b16 %v384
        %v393 = vunpack.c.l.b16 %v385
        %v394 = vunpack.c.l.b16 %v386
        %v395 = vunpack.c.l.b16 %v387
        %v396 = vpack.c.b16 %v393, %v392
        %v397 = vpack.c.b16 %v395, %v394
        %v401 = vsel %vm325, %v383, 0
        %403 = vmatprep.subr.bf16.mxu0 0
        %404 = vmatpush1.bf16.msra.mxu0 %v396
        %405 = vmatprep.subr.bf16.mxu0 0
        %406 = vmatpush1.bf16.msra.mxu0 %v397
        %407 = vmatprep.subr.bf16.mxu0 0
        %408 = vmatpush1.bf16.msra.mxu0 0
        %409 = vmatprep.subr.bf16.mxu0 0
        %410 = vmatpush1.bf16.msra.mxu0 0
        %411 = vmatprep.subr.bf16.mxu0 0
        %412 = vmatpush1.bf16.msra.mxu0 0
        %413 = vmatprep.subr.bf16.mxu0 0
        %414 = vmatpush1.bf16.msra.mxu0 0
        %415 = vmatprep.subr.bf16.mxu0 0
        %416 = vmatpush1.bf16.msra.mxu0 0
        %417 = vmatprep.subr.bf16.mxu0 0
        %418 = vmatpush1.bf16.msra.mxu0 0
        %419 = vmatprep.subr.bf16.mxu0 0
        %420 = vmatpush1.bf16.msra.mxu0 0
        %421 = vmatprep.subr.bf16.mxu0 0
        %422 = vmatpush1.bf16.msra.mxu0 0
        %423 = vmatprep.subr.bf16.mxu0 0
        %424 = vmatpush1.bf16.msra.mxu0 0
        %425 = vmatprep.subr.bf16.mxu0 0
        %426 = vmatpush1.bf16.msra.mxu0 0
        %427 = vmatprep.subr.bf16.mxu0 0
        %428 = vmatpush1.bf16.msra.mxu0 0
        %429 = vmatprep.subr.bf16.mxu0 0
        %430 = vmatpush1.bf16.msra.mxu0 0
        %431 = vmatprep.subr.bf16.mxu0 0
        %432 = vmatpush1.bf16.msra.mxu0 0
        %433 = vmatprep.subr.bf16.mxu0 0
        %434 = vmatpush1.bf16.msra.mxu0 0
        %435 = vmatprep.mubr.bf16.mxu0 0
        %436 = vmatmul.mubr.bf16.gmra.mrb[0].mxu0 %v401
        %v437 = vpop.f32.mrb[0].mxu0
        %v438 = vadd.f32 0.0, %v437
        %v439 = vpop.f32.mrb[0].mxu0
        %v440 = vpop.f32.mrb[0].mxu0
        %v441 = vadd.f32 0.0, %v440
        %v442 = vpop.f32.mrb[0].mxu0
        %443 = vdwg.mxu0
        %v444 = vpack.c.bf16 %v441, %v438
        %v446 = vunpack.c.l.b16 %v444
        %v447 = vunpack.c.h.b16 %v444
        %v448 = vpack.c.b16 %v446, %v446
        %v449 = vpack.c.b16 %v447, %v447
        %vm452 = vcmask 125952
        %453 = vst.msk [vmem:[%s303] sm:$0xf] %vm452, %v448
        %454 = vst.msk [vmem:[%s303 + $0x4] sm:$0xf] %vm452, %v449
        %455 = vrot.lane.b32.xlu0 %v448, 96
        %v456 = vpop.permute.xlu0 %455
        %457 = vrot.lane.b32.xlu0 %v449, 96
        %v458 = vpop.permute.xlu0 %457
        %461 = vst.msk [vmem:[%s309] sm:$0xf] %vm452, %v456
        %462 = vst.msk [vmem:[%s309 + $0x4] sm:$0xf] %vm452, %v458
        %463 = vrot.lane.b32.xlu0 %v448, 64
        %v464 = vpop.permute.xlu0 %463
        %465 = vrot.lane.b32.xlu0 %v449, 64
        %v466 = vpop.permute.xlu0 %465
        %469 = vst.msk [vmem:[%s315] sm:$0xf] %vm452, %v464
        %470 = vst.msk [vmem:[%s315 + $0x4] sm:$0xf] %vm452, %v466
        %471 = vrot.lane.b32.xlu0 %v448, 112
        %v472 = vpop.permute.xlu0 %471
        %473 = vrot.lane.b32.xlu0 %v449, 112
        %v474 = vpop.permute.xlu0 %473
        %s477 = scalar_lea.vmem %s303, 8 [#allocation6]
        %478 = vst.msk [vmem:[%s477] sm:$0xf] %vm452, %v472
        %479 = vst.msk [vmem:[%s477 + $0x4] sm:$0xf] %vm452, %v474
        %480 = vrot.lane.b32.xlu0 %v448, 80
        %v481 = vpop.permute.xlu0 %480
        %482 = vrot.lane.b32.xlu0 %v449, 80
        %v483 = vpop.permute.xlu0 %482
        %s486 = scalar_lea.vmem %s309, 8 [#allocation7]
        %487 = vst.msk [vmem:[%s486] sm:$0xf] %vm452, %v481
        %488 = vst.msk [vmem:[%s486 + $0x4] sm:$0xf] %vm452, %v483
        %489 = vrot.lane.b32.xlu0 %v448, 48
        %v490 = vpop.permute.xlu0 %489
        %491 = vrot.lane.b32.xlu0 %v449, 48
        %v492 = vpop.permute.xlu0 %491
        %s495 = scalar_lea.vmem %s315, 8 [#allocation8]
        %496 = vst.msk [vmem:[%s495] sm:$0xf] %vm452, %v490
        %497 = vst.msk [vmem:[%s495 + $0x4] sm:$0xf] %vm452, %v492
        %s498 = sand.u32 %s135, 1
        %s499 = sand.u32 %s135, 1
        %s500 = smul.addr %s499, 16
        %s501 = scalar_lea.vmem [#allocation6], %s500
        %s502 = sand.u32 %s163, 1
        %s503 = sand.u32 %s163, 1
        %s504 = smul.addr %s503, 16
        %s505 = scalar_lea.vmem [#allocation7], %s504
        %s506 = sand.u32 %s191, 1
        %s507 = sand.u32 %s191, 1
        %s508 = smul.addr %s507, 16
        %s509 = scalar_lea.vmem [#allocation8], %s508
        // Predicated region
        $region45: #{tpu_custom_call.1} parent=35 // pred_check
          %p510 = pneg %p145
        $region46: #{tpu_custom_call.1} parent=35 // pred_check_branch
          %512 = sbr.rel (%p510) target = $region48
        $region47: #{tpu_custom_call.1} parent=35 // pred_region
          %s513 = smul.u32 2, %s27
          %s514 = smul.addr %s26, 8
          %s515 = sadd.s32 %s513, %s514
          %s516 = smul.addr %s515, 4
          %s517 = scalar_lea.vmem %s4, %s516
          // Predicated region
          $region49: #{tpu_custom_call.1} parent=47 // pred_check
            _
          $region50: #{tpu_custom_call.1} parent=47 // pred_check_branch
            %519 = sbr.rel (0) target = $region52
          $region51: #{tpu_custom_call.1} parent=47 // pred_region
            // Predicated region
            $region53: #{tpu_custom_call.1} parent=51 // pred_check
              _
            $region54: #{tpu_custom_call.1} parent=51 // pred_check_branch
              %521 = sbr.rel target = $region56
            $region55: #{tpu_custom_call.1} parent=51 // pred_region
              // Predicated region
              $region68: #{tpu_custom_call.1} parent=55 // pred_check
                _
              $region69: #{tpu_custom_call.1} parent=55 // pred_check_branch
                %542 = sbr.rel (0) target = $region71
              $region70: #{tpu_custom_call.1} parent=55 // pred_region
                loop: start=0, step=1, limit=1
                $region72: #{tpu_custom_call.1} parent=70 // loop_pre_header
                  _
                $region73: #{tpu_custom_call.1} parent=70 // loop_header
                  %s544 = sphi 0, %s548
                  %p545 = scmp.ge.s32.totalorder %s544, 1
                  %s549 = sphi %s501, %s501
                  %s550 = sphi %s517, %s517
                $region74: #{tpu_custom_call.1} parent=70 // loop_header_branch
                  %547 = sbr.rel (%p545) target = $region78
                $region75: #{tpu_custom_call.1} parent=70 // loop_body
                  _
                $region76: #{tpu_custom_call.1} parent=70 // loop_footer
                  %s548 = sadd.s32 1, %s544
                $region77: #{tpu_custom_call.1} parent=70 // loop_footer_branch
                  %543 = sbr.rel target = $region73
                $region78: #{tpu_custom_call.1} parent=70 // loop_exit
                  _
                loop: start=0, step=1, limit=1
                $region79: #{tpu_custom_call.1} parent=70 // loop_pre_header
                  _
                $region80: #{tpu_custom_call.1} parent=70 // loop_header
                  %s553 = sphi 0, %s557
                  %p554 = scmp.ge.s32.totalorder %s553, 1
                  %s558 = sphi %s501, %s501
                  %s559 = sphi %s517, %s517
                $region81: #{tpu_custom_call.1} parent=70 // loop_header_branch
                  %556 = sbr.rel (%p554) target = $region85
                $region82: #{tpu_custom_call.1} parent=70 // loop_body
                  %v560 = vld [vmem:[%s558] sm:$0xf]
                  %561 = vst [vmem:[%s559] sm:$0xf] %v560
                  %v562 = vld [vmem:[%s558 + $0x4] sm:$0xf]
                  %563 = vst [vmem:[%s559 + $0x4] sm:$0xf] %v562
                  %v564 = vld [vmem:[%s558 + $0x8] sm:$0xf]
                  %565 = vst [vmem:[%s559 + $0x10] sm:$0xf] %v564
                  %v566 = vld [vmem:[%s558 + $0xc] sm:$0xf]
                  %567 = vst [vmem:[%s559 + $0x14] sm:$0xf] %v566
                $region83: #{tpu_custom_call.1} parent=70 // loop_footer
                  %s557 = sadd.s32 1, %s553
                $region84: #{tpu_custom_call.1} parent=70 // loop_footer_branch
                  %552 = sbr.rel target = $region80
                $region85: #{tpu_custom_call.1} parent=70 // loop_exit
                  _
              $region71: #{tpu_custom_call.1} parent=55 // pred_fallthru
                _
            $region56: #{tpu_custom_call.1} parent=51 // pred_fallthru
              _
            // Predicated region
            $region57: #{tpu_custom_call.1} parent=51 // pred_check
              _
            $region58: #{tpu_custom_call.1} parent=51 // pred_check_branch
              %523 = sbr.rel (0) target = $region60
            $region59: #{tpu_custom_call.1} parent=51 // pred_region
              loop: start=0, step=1, limit=1
              $region61: #{tpu_custom_call.1} parent=59 // loop_pre_header
                _
              $region62: #{tpu_custom_call.1} parent=59 // loop_header
                %s526 = sphi 0, %s530
                %p527 = scmp.ge.s32.totalorder %s526, 1
                %s531 = sphi %s501, %s501
                %s532 = sphi %s517, %s517
              $region63: #{tpu_custom_call.1} parent=59 // loop_header_branch
                %529 = sbr.rel (%p527) target = $region67
              $region64: #{tpu_custom_call.1} parent=59 // loop_body
                %v533 = vld [vmem:[%s531] sm:$0xf]
                %534 = vst [vmem:[%s532] sm:$0xf] %v533
                %v535 = vld [vmem:[%s531 + $0x4] sm:$0xf]
                %536 = vst [vmem:[%s532 + $0x4] sm:$0xf] %v535
                %v537 = vld [vmem:[%s531 + $0x8] sm:$0xf]
                %538 = vst [vmem:[%s532 + $0x10] sm:$0xf] %v537
                %v539 = vld [vmem:[%s531 + $0xc] sm:$0xf]
                %540 = vst [vmem:[%s532 + $0x14] sm:$0xf] %v539
              $region65: #{tpu_custom_call.1} parent=59 // loop_footer
                %s530 = sadd.s32 1, %s526
              $region66: #{tpu_custom_call.1} parent=59 // loop_footer_branch
                %525 = sbr.rel target = $region62
              $region67: #{tpu_custom_call.1} parent=59 // loop_exit
                _
            $region60: #{tpu_custom_call.1} parent=51 // pred_fallthru
              _
          $region52: #{tpu_custom_call.1} parent=47 // pred_fallthru
            _
          %568 = vnop
        $region48: #{tpu_custom_call.1} parent=35 // pred_fallthru
          _
        // Predicated region
        $region86: #{tpu_custom_call.1} parent=35 // pred_check
          %p569 = pneg %p173
        $region87: #{tpu_custom_call.1} parent=35 // pred_check_branch
          %571 = sbr.rel (%p569) target = $region89
        $region88: #{tpu_custom_call.1} parent=35 // pred_region
          %s572 = smul.u32 2, %s27
          %s573 = smul.addr %s26, 8
          %s574 = sadd.s32 %s572, %s573
          %s575 = smul.addr %s574, 4
          %s576 = scalar_lea.vmem %s5, %s575
          // Predicated region
          $region90: #{tpu_custom_call.1} parent=88 // pred_check
            _
          $region91: #{tpu_custom_call.1} parent=88 // pred_check_branch
            %578 = sbr.rel (0) target = $region93
          $region92: #{tpu_custom_call.1} parent=88 // pred_region
            // Predicated region
            $region94: #{tpu_custom_call.1} parent=92 // pred_check
              _
            $region95: #{tpu_custom_call.1} parent=92 // pred_check_branch
              %580 = sbr.rel target = $region97
            $region96: #{tpu_custom_call.1} parent=92 // pred_region
              // Predicated region
              $region109: #{tpu_custom_call.1} parent=96 // pred_check
                _
              $region110: #{tpu_custom_call.1} parent=96 // pred_check_branch
                %601 = sbr.rel (0) target = $region112
              $region111: #{tpu_custom_call.1} parent=96 // pred_region
                loop: start=0, step=1, limit=1
                $region113: #{tpu_custom_call.1} parent=111 // loop_pre_header
                  _
                $region114: #{tpu_custom_call.1} parent=111 // loop_header
                  %s603 = sphi 0, %s607
                  %p604 = scmp.ge.s32.totalorder %s603, 1
                  %s608 = sphi %s505, %s505
                  %s609 = sphi %s576, %s576
                $region115: #{tpu_custom_call.1} parent=111 // loop_header_branch
                  %606 = sbr.rel (%p604) target = $region119
                $region116: #{tpu_custom_call.1} parent=111 // loop_body
                  _
                $region117: #{tpu_custom_call.1} parent=111 // loop_footer
                  %s607 = sadd.s32 1, %s603
                $region118: #{tpu_custom_call.1} parent=111 // loop_footer_branch
                  %602 = sbr.rel target = $region114
                $region119: #{tpu_custom_call.1} parent=111 // loop_exit
                  _
                loop: start=0, step=1, limit=1
                $region120: #{tpu_custom_call.1} parent=111 // loop_pre_header
                  _
                $region121: #{tpu_custom_call.1} parent=111 // loop_header
                  %s612 = sphi 0, %s616
                  %p613 = scmp.ge.s32.totalorder %s612, 1
                  %s617 = sphi %s505, %s505
                  %s618 = sphi %s576, %s576
                $region122: #{tpu_custom_call.1} parent=111 // loop_header_branch
                  %615 = sbr.rel (%p613) target = $region126
                $region123: #{tpu_custom_call.1} parent=111 // loop_body
                  %v619 = vld [vmem:[%s617] sm:$0xf]
                  %620 = vst [vmem:[%s618] sm:$0xf] %v619
                  %v621 = vld [vmem:[%s617 + $0x4] sm:$0xf]
                  %622 = vst [vmem:[%s618 + $0x4] sm:$0xf] %v621
                  %v623 = vld [vmem:[%s617 + $0x8] sm:$0xf]
                  %624 = vst [vmem:[%s618 + $0x10] sm:$0xf] %v623
                  %v625 = vld [vmem:[%s617 + $0xc] sm:$0xf]
                  %626 = vst [vmem:[%s618 + $0x14] sm:$0xf] %v625
                $region124: #{tpu_custom_call.1} parent=111 // loop_footer
                  %s616 = sadd.s32 1, %s612
                $region125: #{tpu_custom_call.1} parent=111 // loop_footer_branch
                  %611 = sbr.rel target = $region121
                $region126: #{tpu_custom_call.1} parent=111 // loop_exit
                  _
              $region112: #{tpu_custom_call.1} parent=96 // pred_fallthru
                _
            $region97: #{tpu_custom_call.1} parent=92 // pred_fallthru
              _
            // Predicated region
            $region98: #{tpu_custom_call.1} parent=92 // pred_check
              _
            $region99: #{tpu_custom_call.1} parent=92 // pred_check_branch
              %582 = sbr.rel (0) target = $region101
            $region100: #{tpu_custom_call.1} parent=92 // pred_region
              loop: start=0, step=1, limit=1
              $region102: #{tpu_custom_call.1} parent=100 // loop_pre_header
                _
              $region103: #{tpu_custom_call.1} parent=100 // loop_header
                %s585 = sphi 0, %s589
                %p586 = scmp.ge.s32.totalorder %s585, 1
                %s590 = sphi %s505, %s505
                %s591 = sphi %s576, %s576
              $region104: #{tpu_custom_call.1} parent=100 // loop_header_branch
                %588 = sbr.rel (%p586) target = $region108
              $region105: #{tpu_custom_call.1} parent=100 // loop_body
                %v592 = vld [vmem:[%s590] sm:$0xf]
                %593 = vst [vmem:[%s591] sm:$0xf] %v592
                %v594 = vld [vmem:[%s590 + $0x4] sm:$0xf]
                %595 = vst [vmem:[%s591 + $0x4] sm:$0xf] %v594
                %v596 = vld [vmem:[%s590 + $0x8] sm:$0xf]
                %597 = vst [vmem:[%s591 + $0x10] sm:$0xf] %v596
                %v598 = vld [vmem:[%s590 + $0xc] sm:$0xf]
                %599 = vst [vmem:[%s591 + $0x14] sm:$0xf] %v598
              $region106: #{tpu_custom_call.1} parent=100 // loop_footer
                %s589 = sadd.s32 1, %s585
              $region107: #{tpu_custom_call.1} parent=100 // loop_footer_branch
                %584 = sbr.rel target = $region103
              $region108: #{tpu_custom_call.1} parent=100 // loop_exit
                _
            $region101: #{tpu_custom_call.1} parent=92 // pred_fallthru
              _
          $region93: #{tpu_custom_call.1} parent=88 // pred_fallthru
            _
          %627 = vnop
        $region89: #{tpu_custom_call.1} parent=35 // pred_fallthru
          _
        // Predicated region
        $region127: #{tpu_custom_call.1} parent=35 // pred_check
          %p628 = pneg %p201
        $region128: #{tpu_custom_call.1} parent=35 // pred_check_branch
          %630 = sbr.rel (%p628) target = $region130
        $region129: #{tpu_custom_call.1} parent=35 // pred_region
          %s631 = smul.u32 2, %s27
          %s632 = smul.addr %s26, 8
          %s633 = sadd.s32 %s631, %s632
          %s634 = smul.addr %s633, 4
          %s635 = scalar_lea.vmem %s6, %s634
          // Predicated region
          $region131: #{tpu_custom_call.1} parent=129 // pred_check
            _
          $region132: #{tpu_custom_call.1} parent=129 // pred_check_branch
            %637 = sbr.rel (0) target = $region134
          $region133: #{tpu_custom_call.1} parent=129 // pred_region
            // Predicated region
            $region135: #{tpu_custom_call.1} parent=133 // pred_check
              _
            $region136: #{tpu_custom_call.1} parent=133 // pred_check_branch
              %639 = sbr.rel target = $region138
            $region137: #{tpu_custom_call.1} parent=133 // pred_region
              // Predicated region
              $region150: #{tpu_custom_call.1} parent=137 // pred_check
                _
              $region151: #{tpu_custom_call.1} parent=137 // pred_check_branch
                %660 = sbr.rel (0) target = $region153
              $region152: #{tpu_custom_call.1} parent=137 // pred_region
                loop: start=0, step=1, limit=1
                $region154: #{tpu_custom_call.1} parent=152 // loop_pre_header
                  _
                $region155: #{tpu_custom_call.1} parent=152 // loop_header
                  %s662 = sphi 0, %s666
                  %p663 = scmp.ge.s32.totalorder %s662, 1
                  %s667 = sphi %s509, %s509
                  %s668 = sphi %s635, %s635
                $region156: #{tpu_custom_call.1} parent=152 // loop_header_branch
                  %665 = sbr.rel (%p663) target = $region160
                $region157: #{tpu_custom_call.1} parent=152 // loop_body
                  _
                $region158: #{tpu_custom_call.1} parent=152 // loop_footer
                  %s666 = sadd.s32 1, %s662
                $region159: #{tpu_custom_call.1} parent=152 // loop_footer_branch
                  %661 = sbr.rel target = $region155
                $region160: #{tpu_custom_call.1} parent=152 // loop_exit
                  _
                loop: start=0, step=1, limit=1
                $region161: #{tpu_custom_call.1} parent=152 // loop_pre_header
                  _
                $region162: #{tpu_custom_call.1} parent=152 // loop_header
                  %s671 = sphi 0, %s675
                  %p672 = scmp.ge.s32.totalorder %s671, 1
                  %s676 = sphi %s509, %s509
                  %s677 = sphi %s635, %s635
                $region163: #{tpu_custom_call.1} parent=152 // loop_header_branch
                  %674 = sbr.rel (%p672) target = $region167
                $region164: #{tpu_custom_call.1} parent=152 // loop_body
                  %v678 = vld [vmem:[%s676] sm:$0xf]
                  %679 = vst [vmem:[%s677] sm:$0xf] %v678
                  %v680 = vld [vmem:[%s676 + $0x4] sm:$0xf]
                  %681 = vst [vmem:[%s677 + $0x4] sm:$0xf] %v680
                  %v682 = vld [vmem:[%s676 + $0x8] sm:$0xf]
                  %683 = vst [vmem:[%s677 + $0x10] sm:$0xf] %v682
                  %v684 = vld [vmem:[%s676 + $0xc] sm:$0xf]
                  %685 = vst [vmem:[%s677 + $0x14] sm:$0xf] %v684
                $region165: #{tpu_custom_call.1} parent=152 // loop_footer
                  %s675 = sadd.s32 1, %s671
                $region166: #{tpu_custom_call.1} parent=152 // loop_footer_branch
                  %670 = sbr.rel target = $region162
                $region167: #{tpu_custom_call.1} parent=152 // loop_exit
                  _
              $region153: #{tpu_custom_call.1} parent=137 // pred_fallthru
                _
            $region138: #{tpu_custom_call.1} parent=133 // pred_fallthru
              _
            // Predicated region
            $region139: #{tpu_custom_call.1} parent=133 // pred_check
              _
            $region140: #{tpu_custom_call.1} parent=133 // pred_check_branch
              %641 = sbr.rel (0) target = $region142
            $region141: #{tpu_custom_call.1} parent=133 // pred_region
              loop: start=0, step=1, limit=1
              $region143: #{tpu_custom_call.1} parent=141 // loop_pre_header
                _
              $region144: #{tpu_custom_call.1} parent=141 // loop_header
                %s644 = sphi 0, %s648
                %p645 = scmp.ge.s32.totalorder %s644, 1
                %s649 = sphi %s509, %s509
                %s650 = sphi %s635, %s635
              $region145: #{tpu_custom_call.1} parent=141 // loop_header_branch
                %647 = sbr.rel (%p645) target = $region149
              $region146: #{tpu_custom_call.1} parent=141 // loop_body
                %v651 = vld [vmem:[%s649] sm:$0xf]
                %652 = vst [vmem:[%s650] sm:$0xf] %v651
                %v653 = vld [vmem:[%s649 + $0x4] sm:$0xf]
                %654 = vst [vmem:[%s650 + $0x4] sm:$0xf] %v653
                %v655 = vld [vmem:[%s649 + $0x8] sm:$0xf]
                %656 = vst [vmem:[%s650 + $0x10] sm:$0xf] %v655
                %v657 = vld [vmem:[%s649 + $0xc] sm:$0xf]
                %658 = vst [vmem:[%s650 + $0x14] sm:$0xf] %v657
              $region147: #{tpu_custom_call.1} parent=141 // loop_footer
                %s648 = sadd.s32 1, %s644
              $region148: #{tpu_custom_call.1} parent=141 // loop_footer_branch
                %643 = sbr.rel target = $region144
              $region149: #{tpu_custom_call.1} parent=141 // loop_exit
                _
            $region142: #{tpu_custom_call.1} parent=133 // pred_fallthru
              _
          $region134: #{tpu_custom_call.1} parent=129 // pred_fallthru
            _
          %686 = vnop
        $region130: #{tpu_custom_call.1} parent=35 // pred_fallthru
          _
      $region36: #{tpu_custom_call.1} parent=5 // pred_fallthru
        _
      %p687 = scmp.le.s32.totalorder 2, %s17
      // Predicated region
      $region168: #{tpu_custom_call.1} parent=5 // pred_check
        %p688 = pneg %p687
      $region169: #{tpu_custom_call.1} parent=5 // pred_check_branch
        %690 = sbr.rel (%p688) target = $region171
      $region170: #{tpu_custom_call.1} parent=5 // pred_region
        %s691 = ssub.s32 %s17, 2
        // Predicated region
        $region172: #{tpu_custom_call.1} parent=170 // pred_check
          %p692 = pneg %p151
        $region173: #{tpu_custom_call.1} parent=170 // pred_check_branch
          %694 = sbr.rel (%p692) target = $region175
        $region174: #{tpu_custom_call.1} parent=170 // pred_region
          %s695 = sand.u32 %s136, 1
          %s696 = sand.u32 %s136, 1
          %s697 = smul.addr %s696, 16
          %s698 = scalar_lea.vmem [#allocation6], %s697
        $region175: #{tpu_custom_call.1} parent=170 // pred_fallthru
          _
        // Predicated region
        $region176: #{tpu_custom_call.1} parent=170 // pred_check
          %p699 = pneg %p179
        $region177: #{tpu_custom_call.1} parent=170 // pred_check_branch
          %701 = sbr.rel (%p699) target = $region179
        $region178: #{tpu_custom_call.1} parent=170 // pred_region
          %s702 = sand.u32 %s164, 1
          %s703 = sand.u32 %s164, 1
          %s704 = smul.addr %s703, 16
          %s705 = scalar_lea.vmem [#allocation7], %s704
        $region179: #{tpu_custom_call.1} parent=170 // pred_fallthru
          _
        // Predicated region
        $region180: #{tpu_custom_call.1} parent=170 // pred_check
          %p706 = pneg %p207
        $region181: #{tpu_custom_call.1} parent=170 // pred_check_branch
          %708 = sbr.rel (%p706) target = $region183
        $region182: #{tpu_custom_call.1} parent=170 // pred_region
          %s709 = sand.u32 %s192, 1
          %s710 = sand.u32 %s192, 1
          %s711 = smul.addr %s710, 16
          %s712 = scalar_lea.vmem [#allocation8], %s711
        $region183: #{tpu_custom_call.1} parent=170 // pred_fallthru
          _
      $region171: #{tpu_custom_call.1} parent=5 // pred_fallthru
        _
    $region6: #{tpu_custom_call.1} parent=1 // loop_footer
      %s21 = sadd.s32 1, %s17
    $region7: #{tpu_custom_call.1} parent=1 // loop_footer_branch
      %16 = sbr.rel target = $region3
    $region8: #{tpu_custom_call.1} parent=1 // loop_exit
      _
    %713 = vsyncpa [#allocation3], 1
    %s714 = scalar_lea.sflag [#allocation3], 1
    %715 = vsyncpa %s714, 1
    %716 = vsyncpa [#allocation5], 1

</llo_original>
